<compile_context>
chip_gen: v7x
topology: tpu7x:2x2x1
jax: 0.10.0
libtpu: 0.0.40
codegen_flags: <defaults>
</compile_context>

<pallas_src>
import functools

import jax
import jax.numpy as jnp
from jax.experimental import pallas as pl
from jax.experimental.pallas import tpu as pltpu

L = 2.0          # pendulum length
HIDDEN = 32      # g_vf hidden width
BATCH = 256      # demo batch
BLOCK_B = 128    # batch lanes per grid step


def pendulum_vf_kernel(t_ref, x_ref, w1t_ref, w1g_ref, b1_ref, w2_ref, b2_ref,
                       o_ref):
    # t_ref:   (1,)          SMEM (scalar prefetch)
    # x_ref:   (3, bB)       rows = (phi, omega, g); batch along lanes
    # w1t_ref: (H, 1)        first-layer weights for the t input
    # w1g_ref: (H, 1)        first-layer weights for the g input
    # b1_ref:  (H, 1)
    # w2_ref:  (H, 1)        second-layer weights
    # b2_ref:  (1, 1)
    # o_ref:   (3, bB)       rows = (phi_dot, omega_dot, g_dot)
    x = x_ref[...]
    phi = x[0:1, :]       # (1, bB)
    omega = x[1:2, :]     # (1, bB)
    g = x[2:3, :]         # (1, bB)
    t = t_ref[0]

    # ---- g_vf MLP on [t, g], MXU-free -------------------------------------
    # (H,1)*scalar + (H,1)*(1,bB) + (H,1)  ->  (H, bB)   (VPU broadcasts,
    #                                                     EUP tanh)
    h = jnp.tanh(w1t_ref[...] * t + w1g_ref[...] * g + b1_ref[...])
    # (H,1)*(H,bB) summed over H  ->  (1, bB)             (XLU sublane reduce)
    g_dot = jnp.sum(w2_ref[...] * h, axis=0, keepdims=True) + b2_ref[...]

    # ---- pendulum dynamics -------------------------------------------------
    phi_dot = omega
    omega_dot = -(g * (1.0 / L)) * jnp.sin(phi)

    # ---- assemble (3, bB) with one lane-dense store (no concatenate) ------
    row = jax.lax.broadcasted_iota(jnp.int32, x.shape, 0)
    o_ref[...] = jnp.where(row == 0, phi_dot,
                           jnp.where(row == 1, omega_dot, g_dot))


@functools.partial(jax.jit, static_argnames=("block_b",))
def pendulum_node_vf(t, x, w1, b1, w2, b2, *, block_b=BLOCK_B):
    """t: scalar float32, x: (B, 3) float32 -> (B, 3) float32."""
    B = x.shape[0]
    n_blocks = pl.cdiv(B, block_b)
    b_pad = n_blocks * block_b
    h = w1.shape[1]

    # Lane-dense view: batch along lanes, padded to a multiple of block_b.
    x_t = jnp.asarray(x, jnp.float32).T                       # (3, B)
    if b_pad != B:
        x_t = jnp.pad(x_t, ((0, 0), (0, b_pad - B)))          # (3, b_pad)

    # Pre-split / reshape g_vf params so the kernel needs no in-kernel slicing.
    w1t = w1[0, :].reshape(h, 1).astype(jnp.float32)
    w1g = w1[1, :].reshape(h, 1).astype(jnp.float32)
    b1c = b1.reshape(h, 1).astype(jnp.float32)
    w2c = w2.reshape(h, 1).astype(jnp.float32)
    b2c = b2.reshape(1, 1).astype(jnp.float32)
    t_arr = jnp.reshape(jnp.asarray(t, jnp.float32), (1,))

    grid_spec = pltpu.PrefetchScalarGridSpec(
        num_scalar_prefetch=1,              # t -> SMEM, available everywhere
        grid=(n_blocks,),
        in_specs=[
            pl.BlockSpec((3, block_b), lambda i, t_s: (0, i)),   # x (3, b_pad)
            pl.BlockSpec((h, 1), lambda i, t_s: (0, 0)),         # w1_t
            pl.BlockSpec((h, 1), lambda i, t_s: (0, 0)),         # w1_g
            pl.BlockSpec((h, 1), lambda i, t_s: (0, 0)),         # b1
            pl.BlockSpec((h, 1), lambda i, t_s: (0, 0)),         # w2
            pl.BlockSpec((1, 1), lambda i, t_s: (0, 0)),         # b2
        ],
        out_specs=pl.BlockSpec((3, block_b), lambda i, t_s: (0, i)),
    )

    out_t = pl.pallas_call(
        pendulum_vf_kernel,
        out_shape=jax.ShapeDtypeStruct((3, b_pad), jnp.float32),
        grid_spec=grid_spec,
        compiler_params=pltpu.CompilerParams(
            dimension_semantics=("parallel",)),   # split batch across TCs (v7x)
    )(t_arr, x_t, w1t, w1g, b1c, w2c, b2c)

    return out_t[:, :B].T                                      # back to (B, 3)


def reference(t, x, w1, b1, w2, b2):
    phi, omega, g = x[:, 0], x[:, 1], x[:, 2]
    inp = jnp.stack([jnp.full_like(g, t), g], axis=1)          # (B, 2)
    hid = jnp.tanh(inp @ w1 + b1)                              # (B, H)
    g_dot = (hid @ w2 + b2)[:, 0]                              # (B,)
    return jnp.stack([omega, -(g / L) * jnp.sin(phi), g_dot], axis=1)


if __name__ == "__main__":
    key = jax.random.PRNGKey(0)
    k_x, k_w1, k_b1, k_w2, k_b2 = jax.random.split(key, 5)

    # state: (B, 3) = (phi, omega, g)
    x = jax.random.normal(k_x, (BATCH, 3), dtype=jnp.float32)
    t = jnp.float32(0.5)

    # deterministic g_vf MLP parameters
    w1 = 0.1 * jax.random.normal(k_w1, (2, HIDDEN), dtype=jnp.float32)
    b1 = 0.1 * jax.random.normal(k_b1, (1, HIDDEN), dtype=jnp.float32)
    w2 = 0.1 * jax.random.normal(k_w2, (HIDDEN, 1), dtype=jnp.float32)
    b2 = 0.1 * jax.random.normal(k_b2, (1, 1), dtype=jnp.float32)

    out = jax.block_until_ready(pendulum_node_vf(t, x, w1, b1, w2, b2))
    ref = reference(t, x, w1, b1, w2, b2)
    assert out.shape == (BATCH, 3)
    assert jnp.allclose(out, ref, atol=1e-5, rtol=1e-4), (out, ref)

    # Ragged batch exercises the lane-padding path in the wrapper.
    x_small = x[:40]
    out_small = jax.block_until_ready(
        pendulum_node_vf(t, x_small, w1, b1, w2, b2))
    ref_small = reference(t, x_small, w1, b1, w2, b2)
    assert out_small.shape == (40, 3)
    assert jnp.allclose(out_small, ref_small, atol=1e-5, rtol=1e-4)

    print("KERNEL_OK")
</pallas_src>

<mosaic_0001>
module attributes {stable_mosaic.version = 11 : i64} {
  func.func @pendulum_vf_kernel(%arg0: i32, %arg1: memref<1xf32, #tpu.memory_space<smem>>, %arg2: memref<3x128xf32, #tpu.memory_space<vmem>>, %arg3: memref<32x1xf32, #tpu.memory_space<vmem>>, %arg4: memref<32x1xf32, #tpu.memory_space<vmem>>, %arg5: memref<32x1xf32, #tpu.memory_space<vmem>>, %arg6: memref<32x1xf32, #tpu.memory_space<vmem>>, %arg7: memref<1x1xf32, #tpu.memory_space<vmem>>, %arg8: memref<3x128xf32, #tpu.memory_space<vmem>>) attributes {dimension_semantics = [#tpu.dimension_semantics<parallel>], iteration_bounds = array<i64: 2>, scalar_prefetch = 1 : i64, scratch_operands = 0 : i64, tpu.core_type = #tpu.core_type<tc>, window_params = [{transform_indices = @transform_0, window_bounds = array<i64: 3, 128>}, {pipeline_mode = #tpu.pipeline_mode<synchronous>, transform_indices = @transform_1, window_bounds = array<i64: 32, 1>}, {pipeline_mode = #tpu.pipeline_mode<synchronous>, transform_indices = @transform_2, window_bounds = array<i64: 32, 1>}, {pipeline_mode = #tpu.pipeline_mode<synchronous>, transform_indices = @transform_3, window_bounds = array<i64: 32, 1>}, {pipeline_mode = #tpu.pipeline_mode<synchronous>, transform_indices = @transform_4, window_bounds = array<i64: 32, 1>}, {pipeline_mode = #tpu.pipeline_mode<synchronous>, transform_indices = @transform_5, window_bounds = array<i64: 1, 1>}, {transform_indices = @transform_6, window_bounds = array<i64: 3, 128>}]} {
    %c0 = arith.constant 0 : index
    %c0_0 = arith.constant 0 : index
    %0 = vector.load %arg2[%c0, %c0_0] : memref<3x128xf32, #tpu.memory_space<vmem>>, vector<3x128xf32>
    %1 = vector.extract_strided_slice %0 {offsets = [0, 0], sizes = [1, 128], strides = [1, 1]} : vector<3x128xf32> to vector<1x128xf32>
    %2 = vector.extract_strided_slice %0 {offsets = [1, 0], sizes = [1, 128], strides = [1, 1]} : vector<3x128xf32> to vector<1x128xf32>
    %3 = vector.extract_strided_slice %0 {offsets = [2, 0], sizes = [1, 128], strides = [1, 1]} : vector<3x128xf32> to vector<1x128xf32>
    %c0_1 = arith.constant 0 : index
    %4 = memref.load %arg1[%c0_1] : memref<1xf32, #tpu.memory_space<smem>>
    %c0_2 = arith.constant 0 : index
    %c0_3 = arith.constant 0 : index
    %5 = vector.load %arg3[%c0_2, %c0_3] : memref<32x1xf32, #tpu.memory_space<vmem>>, vector<32x1xf32>
    %6 = vector.broadcast %4 : f32 to vector<32x1xf32>
    %7 = arith.mulf %5, %6 : vector<32x1xf32>
    %c0_4 = arith.constant 0 : index
    %c0_5 = arith.constant 0 : index
    %8 = vector.load %arg4[%c0_4, %c0_5] : memref<32x1xf32, #tpu.memory_space<vmem>>, vector<32x1xf32>
    %9 = vector.broadcast %8 : vector<32x1xf32> to vector<32x128xf32>
    %10 = vector.broadcast %3 : vector<1x128xf32> to vector<32x128xf32>
    %11 = arith.mulf %9, %10 : vector<32x128xf32>
    %12 = vector.broadcast %7 : vector<32x1xf32> to vector<32x128xf32>
    %13 = arith.addf %12, %11 : vector<32x128xf32>
    %c0_6 = arith.constant 0 : index
    %c0_7 = arith.constant 0 : index
    %14 = vector.load %arg5[%c0_6, %c0_7] : memref<32x1xf32, #tpu.memory_space<vmem>>, vector<32x1xf32>
    %15 = vector.broadcast %14 : vector<32x1xf32> to vector<32x128xf32>
    %16 = arith.addf %13, %15 : vector<32x128xf32>
    %17 = math.tanh %16 : vector<32x128xf32>
    %c0_8 = arith.constant 0 : index
    %c0_9 = arith.constant 0 : index
    %18 = vector.load %arg6[%c0_8, %c0_9] : memref<32x1xf32, #tpu.memory_space<vmem>>, vector<32x1xf32>
    %19 = vector.broadcast %18 : vector<32x1xf32> to vector<32x128xf32>
    %20 = arith.mulf %19, %17 : vector<32x128xf32>
    %cst = arith.constant dense<0.000000e+00> : vector<128xf32>
    %21 = vector.multi_reduction <add>, %20, %cst [0] : vector<32x128xf32> to vector<128xf32>
    %22 = vector.shape_cast %21 : vector<128xf32> to vector<1x128xf32>
    %c0_10 = arith.constant 0 : index
    %c0_11 = arith.constant 0 : index
    %23 = vector.load %arg7[%c0_10, %c0_11] : memref<1x1xf32, #tpu.memory_space<vmem>>, vector<1x1xf32>
    %24 = vector.broadcast %23 : vector<1x1xf32> to vector<1x128xf32>
    %25 = arith.addf %22, %24 : vector<1x128xf32>
    %cst_12 = arith.constant 5.000000e-01 : f32
    %26 = vector.broadcast %cst_12 : f32 to vector<1x128xf32>
    %27 = arith.mulf %3, %26 : vector<1x128xf32>
    %cst_13 = arith.constant 0.000000e+00 : f32
    %28 = vector.broadcast %cst_13 : f32 to vector<1x128xf32>
    %29 = arith.subf %28, %27 : vector<1x128xf32>
    %30 = math.sin %1 : vector<1x128xf32>
    %31 = arith.mulf %29, %30 : vector<1x128xf32>
    %32 = tpu.iota {dimensions = array<i32: 0>} : vector<3x128xi32>
    %c0_i32 = arith.constant 0 : i32
    %33 = vector.broadcast %c0_i32 : i32 to vector<3x128xi32>
    %34 = arith.cmpi eq, %32, %33 : vector<3x128xi32>
    %c1_i32 = arith.constant 1 : i32
    %35 = vector.broadcast %c1_i32 : i32 to vector<3x128xi32>
    %36 = arith.cmpi eq, %32, %35 : vector<3x128xi32>
    %37 = vector.shape_cast %31 : vector<1x128xf32> to vector<1x128xf32>
    %38 = vector.broadcast %37 : vector<1x128xf32> to vector<3x128xf32>
    %39 = vector.shape_cast %25 : vector<1x128xf32> to vector<1x128xf32>
    %40 = vector.broadcast %39 : vector<1x128xf32> to vector<3x128xf32>
    %41 = arith.select %36, %38, %40 : vector<3x128xi1>, vector<3x128xf32>
    %42 = vector.shape_cast %2 : vector<1x128xf32> to vector<1x128xf32>
    %43 = vector.broadcast %42 : vector<1x128xf32> to vector<3x128xf32>
    %44 = arith.select %34, %43, %41 : vector<3x128xi1>, vector<3x128xf32>
    %c0_14 = arith.constant 0 : index
    %c0_15 = arith.constant 0 : index
    %45 = vector.load %arg8[%c0_14, %c0_15] : memref<3x128xf32, #tpu.memory_space<vmem>>, vector<3x128xf32>
    tpu.vector_store %arg8[%c0_14, %c0_15], %44 {strides = array<i32>} : memref<3x128xf32, #tpu.memory_space<vmem>>, vector<3x128xf32>,
    return
  }
  func.func @transform_0(%arg0: i32, %arg1: memref<1xf32, #tpu.memory_space<smem>>) -> (i32, i32) {
    %c0_i32 = arith.constant 0 : i32
    %c0_i32_0 = arith.constant 0 : i32
    return %c0_i32, %arg0 : i32, i32
  }
  func.func @transform_1(%arg0: i32, %arg1: memref<1xf32, #tpu.memory_space<smem>>) -> (i32, i32) {
    %c0_i32 = arith.constant 0 : i32
    %c0_i32_0 = arith.constant 0 : i32
    %c0_i32_1 = arith.constant 0 : i32
    return %c0_i32, %c0_i32_0 : i32, i32
  }
  func.func @transform_2(%arg0: i32, %arg1: memref<1xf32, #tpu.memory_space<smem>>) -> (i32, i32) {
    %c0_i32 = arith.constant 0 : i32
    %c0_i32_0 = arith.constant 0 : i32
    %c0_i32_1 = arith.constant 0 : i32
    return %c0_i32, %c0_i32_0 : i32, i32
  }
  func.func @transform_3(%arg0: i32, %arg1: memref<1xf32, #tpu.memory_space<smem>>) -> (i32, i32) {
    %c0_i32 = arith.constant 0 : i32
    %c0_i32_0 = arith.constant 0 : i32
    %c0_i32_1 = arith.constant 0 : i32
    return %c0_i32, %c0_i32_0 : i32, i32
  }
  func.func @transform_4(%arg0: i32, %arg1: memref<1xf32, #tpu.memory_space<smem>>) -> (i32, i32) {
    %c0_i32 = arith.constant 0 : i32
    %c0_i32_0 = arith.constant 0 : i32
    %c0_i32_1 = arith.constant 0 : i32
    return %c0_i32, %c0_i32_0 : i32, i32
  }
  func.func @transform_5(%arg0: i32, %arg1: memref<1xf32, #tpu.memory_space<smem>>) -> (i32, i32) {
    %c0_i32 = arith.constant 0 : i32
    %c0_i32_0 = arith.constant 0 : i32
    %c0_i32_1 = arith.constant 0 : i32
    return %c0_i32, %c0_i32_0 : i32, i32
  }
  func.func @transform_6(%arg0: i32, %arg1: memref<1xf32, #tpu.memory_space<smem>>) -> (i32, i32) {
    %c0_i32 = arith.constant 0 : i32
    %c0_i32_0 = arith.constant 0 : i32
    return %c0_i32, %arg0 : i32, i32
  }
}

</mosaic_0001>

<llo_original>
// kernel: pendulum_node_vf.1
$region0: #{pendulum_node_vf.1}
  #allocation0 [shape = 'u32[]', space=smem, size = 0x4, offset = 0x4, fixed_abs, tag = 'smem constant byte address 0x4 - core index']
  #allocation1 [shape = 'u32[144,128]{1,0:T(1,128)}', space=vmem, size = 0x12000, scoped, tag = 'internal scratch']
  #allocation2 [shape = 's32[1]{0}', space=sflag, size = 0x4, scoped, tag = 'scoped memory for pendulum_node_vf.1']
  #allocation3 [shape = 'f32[1]{0:T(128)S(6)}', space=smem, size = 0x200, scoped, tag = 'prefetched SMEM operand 0']
  #allocation4 [shape = 'f32[1,1]{1,0:T(1,128)S(1)}', space=vmem, size = 0x200, scoped, tag = 'scoped memory for pendulum_node_vf.1']
  %s0 = inlined_call_operand.<no memory space> [shape: f32[1], index: 0, kind: input, shape index: {}]
  %s1 = inlined_call_operand.vmem [shape: f32[3,256], index: 1, kind: input, shape index: {}]
  %s2 = inlined_call_operand.vmem [shape: f32[32,1], index: 2, kind: input, shape index: {}]
  %s3 = inlined_call_operand.vmem [shape: f32[32,1], index: 3, kind: input, shape index: {}]
  %s4 = inlined_call_operand.vmem [shape: f32[32,1], index: 4, kind: input, shape index: {}]
  %s5 = inlined_call_operand.vmem [shape: f32[32,1], index: 5, kind: input, shape index: {}]
  %s6 = inlined_call_operand.<no memory space> [shape: f32[1,1], index: 6, kind: input, shape index: {}]
  %s7 = inlined_call_operand.hbm [shape: f32[3,256], index: 7, kind: output, shape index: {}]
  %s8 = sld [smem:[#allocation0]]
  $region57: #{pendulum_node_vf.1} parent=0
    _
  %s10 = ssub.s32 1, %s8
  %s11 = scalar_select 0, %s10, %s8
  %12 = sst [smem:[#allocation3]] %s0
  %v13 = vstv %s6
  %14 = vst [vmem:[#allocation4] sm:$0x1] %v13
  $region1: #{pendulum_node_vf.1} parent=0
    #allocation5 [shape = 'u8[4096]{0}', space=vmem, size = 0x1000, scoped, tag = 'output window, operand 0']
    #allocation6 [shape = 's32[2]{0}', space=sflag, size = 0x8, scoped, tag = 'scoped memory for pendulum_node_vf.1']
    %15 = vsyncpa [#allocation6], 0
    %s16 = scalar_lea.sflag [#allocation6], 1
    %17 = vsyncpa %s16, 0
    loop: start=0, step=1, limit=4
    $region2: #{pendulum_node_vf.1} parent=1 // loop_pre_header
      _
    $region3: #{pendulum_node_vf.1} parent=1 // loop_header
      %s19 = sphi 0, %s23
      %p20 = scmp.ge.s32.totalorder %s19, 4
      %s29 = sphi 0, %s31
      %s32 = sphi 0, %s29
      %s33 = sphi 0, %s32
      %s49 = sphi 0, %s33
      %s53 = sphi 0, %s53
      %s55 = sphi 0, %s53
      %s56 = sphi 0, %s55
      %s70 = sphi 0, %s56
      %s74 = sphi 0, %s74
      %s76 = sphi 0, %s74
      %s77 = sphi 0, %s76
      %s91 = sphi 0, %s77
      %s95 = sphi 0, %s95
      %s97 = sphi 0, %s95
      %s98 = sphi 0, %s97
      %s112 = sphi 0, %s98
      %s116 = sphi 0, %s116
      %s118 = sphi 0, %s116
      %s119 = sphi 0, %s118
      %s133 = sphi 0, %s119
      %s137 = sphi 0, %s137
      %s139 = sphi 0, %s137
      %s140 = sphi 0, %s139
      %s154 = sphi 0, %s140
      %s160 = sphi 0, %s162
      %s163 = sphi 0, %s160
      %s164 = sphi 0, %s163
      %s180 = sphi 0, %s164
    $region4: #{pendulum_node_vf.1} parent=1 // loop_header_branch
      %22 = sbr.rel (%p20) target = $region8
    $region5: #{pendulum_node_vf.1} parent=1 // loop_body
      %s24 = ssub.s32 %s19, 1
      %s25 = ssub.s32 %s19, 2
      %s26 = sadd.s32 %s19, 1
      %s27 = ssub.s32 %s19, %s26
      %p28 = scmp.eq.s32.totalorder %s27, 0
      %s30 = sadd.s32 %s29, 1
      %s31 = scalar_select %p28, %s29, %s30
      %p34 = pneg %p28
      %p35 = scmp.eq.s32.totalorder %s19, 1
      %p36 = por %p34, %p35
      %p37 = scmp.ne.s32.totalorder %s29, %s32
      %p38 = scmp.eq.s32.totalorder %s19, 0
      %p39 = por %p37, %p38
      %p40 = scmp.ne.s32.totalorder %s29, %s32
      %p41 = scmp.eq.s32.totalorder %s24, 1
      %p42 = por %p40, %p41
      %p43 = scmp.ne.s32.totalorder %s32, %s33
      %p44 = scmp.eq.s32.totalorder %s24, 0
      %p45 = por %p43, %p44
      %p46 = scmp.ne.s32.totalorder %s32, %s33
      %p47 = scmp.eq.s32.totalorder %s25, 1
      %p48 = por %p46, %p47
      %p50 = scmp.ne.s32.totalorder %s33, %s49
      %p51 = scmp.eq.s32.totalorder %s25, 0
      %p52 = por %p50, %p51
      %s54 = sadd.s32 %s53, 1
      %p57 = scmp.eq.s32.totalorder %s19, 1
      %p58 = scmp.ne.s32.totalorder %s53, %s55
      %p59 = scmp.eq.s32.totalorder %s19, 0
      %p60 = por %p58, %p59
      %p61 = scmp.ne.s32.totalorder %s53, %s55
      %p62 = scmp.eq.s32.totalorder %s24, 1
      %p63 = por %p61, %p62
      %p64 = scmp.ne.s32.totalorder %s55, %s56
      %p65 = scmp.eq.s32.totalorder %s24, 0
      %p66 = por %p64, %p65
      %p67 = scmp.ne.s32.totalorder %s55, %s56
      %p68 = scmp.eq.s32.totalorder %s25, 1
      %p69 = por %p67, %p68
      %p71 = scmp.ne.s32.totalorder %s56, %s70
      %p72 = scmp.eq.s32.totalorder %s25, 0
      %p73 = por %p71, %p72
      %s75 = sadd.s32 %s74, 1
      %p78 = scmp.eq.s32.totalorder %s19, 1
      %p79 = scmp.ne.s32.totalorder %s74, %s76
      %p80 = scmp.eq.s32.totalorder %s19, 0
      %p81 = por %p79, %p80
      %p82 = scmp.ne.s32.totalorder %s74, %s76
      %p83 = scmp.eq.s32.totalorder %s24, 1
      %p84 = por %p82, %p83
      %p85 = scmp.ne.s32.totalorder %s76, %s77
      %p86 = scmp.eq.s32.totalorder %s24, 0
      %p87 = por %p85, %p86
      %p88 = scmp.ne.s32.totalorder %s76, %s77
      %p89 = scmp.eq.s32.totalorder %s25, 1
      %p90 = por %p88, %p89
      %p92 = scmp.ne.s32.totalorder %s77, %s91
      %p93 = scmp.eq.s32.totalorder %s25, 0
      %p94 = por %p92, %p93
      %s96 = sadd.s32 %s95, 1
      %p99 = scmp.eq.s32.totalorder %s19, 1
      %p100 = scmp.ne.s32.totalorder %s95, %s97
      %p101 = scmp.eq.s32.totalorder %s19, 0
      %p102 = por %p100, %p101
      %p103 = scmp.ne.s32.totalorder %s95, %s97
      %p104 = scmp.eq.s32.totalorder %s24, 1
      %p105 = por %p103, %p104
      %p106 = scmp.ne.s32.totalorder %s97, %s98
      %p107 = scmp.eq.s32.totalorder %s24, 0
      %p108 = por %p106, %p107
      %p109 = scmp.ne.s32.totalorder %s97, %s98
      %p110 = scmp.eq.s32.totalorder %s25, 1
      %p111 = por %p109, %p110
      %p113 = scmp.ne.s32.totalorder %s98, %s112
      %p114 = scmp.eq.s32.totalorder %s25, 0
      %p115 = por %p113, %p114
      %s117 = sadd.s32 %s116, 1
      %p120 = scmp.eq.s32.totalorder %s19, 1
      %p121 = scmp.ne.s32.totalorder %s116, %s118
      %p122 = scmp.eq.s32.totalorder %s19, 0
      %p123 = por %p121, %p122
      %p124 = scmp.ne.s32.totalorder %s116, %s118
      %p125 = scmp.eq.s32.totalorder %s24, 1
      %p126 = por %p124, %p125
      %p127 = scmp.ne.s32.totalorder %s118, %s119
      %p128 = scmp.eq.s32.totalorder %s24, 0
      %p129 = por %p127, %p128
      %p130 = scmp.ne.s32.totalorder %s118, %s119
      %p131 = scmp.eq.s32.totalorder %s25, 1
      %p132 = por %p130, %p131
      %p134 = scmp.ne.s32.totalorder %s119, %s133
      %p135 = scmp.eq.s32.totalorder %s25, 0
      %p136 = por %p134, %p135
      %s138 = sadd.s32 %s137, 1
      %p141 = scmp.eq.s32.totalorder %s19, 1
      %p142 = scmp.ne.s32.totalorder %s137, %s139
      %p143 = scmp.eq.s32.totalorder %s19, 0
      %p144 = por %p142, %p143
      %p145 = scmp.ne.s32.totalorder %s137, %s139
      %p146 = scmp.eq.s32.totalorder %s24, 1
      %p147 = por %p145, %p146
      %p148 = scmp.ne.s32.totalorder %s139, %s140
      %p149 = scmp.eq.s32.totalorder %s24, 0
      %p150 = por %p148, %p149
      %p151 = scmp.ne.s32.totalorder %s139, %s140
      %p152 = scmp.eq.s32.totalorder %s25, 1
      %p153 = por %p151, %p152
      %p155 = scmp.ne.s32.totalorder %s140, %s154
      %p156 = scmp.eq.s32.totalorder %s25, 0
      %p157 = por %p155, %p156
      %s158 = ssub.s32 %s19, %s26
      %p159 = scmp.eq.s32.totalorder %s158, 0
      %s161 = sadd.s32 %s160, 1
      %s162 = scalar_select %p159, %s160, %s161
      %p165 = pneg %p159
      %p166 = scmp.eq.s32.totalorder %s19, 1
      %p167 = por %p165, %p166
      %p168 = scmp.ne.s32.totalorder %s160, %s163
      %p169 = scmp.eq.s32.totalorder %s19, 0
      %p170 = por %p168, %p169
      %p171 = scmp.ne.s32.totalorder %s160, %s163
      %p172 = scmp.eq.s32.totalorder %s24, 1
      %p173 = por %p171, %p172
      %p174 = scmp.ne.s32.totalorder %s163, %s164
      %p175 = scmp.eq.s32.totalorder %s24, 0
      %p176 = por %p174, %p175
      %p177 = scmp.ne.s32.totalorder %s163, %s164
      %p178 = scmp.eq.s32.totalorder %s25, 1
      %p179 = por %p177, %p178
      %p181 = scmp.ne.s32.totalorder %s164, %s180
      %p182 = scmp.eq.s32.totalorder %s25, 0
      %p183 = por %p181, %p182
      %p184 = scmp.le.s32.totalorder 1, %s19
      %p185 = scmp.lt.s32.totalorder %s19, 3
      %p186 = pnand %p184, %p185
      %p187 = pneg %p186
      // Predicated region
      $region9: #{pendulum_node_vf.1} parent=5 // pred_check
        _
      $region10: #{pendulum_node_vf.1} parent=5 // pred_check_branch
        %189 = sbr.rel (%p186) target = $region12
      $region11: #{pendulum_node_vf.1} parent=5 // pred_region
        %s190 = ssub.s32 %s19, 1
        // Predicated region
        $region13: #{pendulum_node_vf.1} parent=11 // pred_check
          %p191 = pneg %p66
        $region14: #{pendulum_node_vf.1} parent=11 // pred_check_branch
          %193 = sbr.rel (%p191) target = $region16
        $region15: #{pendulum_node_vf.1} parent=11 // pred_region
          _
        $region16: #{pendulum_node_vf.1} parent=11 // pred_fallthru
          _
        // Predicated region
        $region17: #{pendulum_node_vf.1} parent=11 // pred_check
          %p194 = pneg %p87
        $region18: #{pendulum_node_vf.1} parent=11 // pred_check_branch
          %196 = sbr.rel (%p194) target = $region20
        $region19: #{pendulum_node_vf.1} parent=11 // pred_region
          _
        $region20: #{pendulum_node_vf.1} parent=11 // pred_fallthru
          _
        // Predicated region
        $region21: #{pendulum_node_vf.1} parent=11 // pred_check
          %p197 = pneg %p108
        $region22: #{pendulum_node_vf.1} parent=11 // pred_check_branch
          %199 = sbr.rel (%p197) target = $region24
        $region23: #{pendulum_node_vf.1} parent=11 // pred_region
          _
        $region24: #{pendulum_node_vf.1} parent=11 // pred_fallthru
          _
        // Predicated region
        $region25: #{pendulum_node_vf.1} parent=11 // pred_check
          %p200 = pneg %p129
        $region26: #{pendulum_node_vf.1} parent=11 // pred_check_branch
          %202 = sbr.rel (%p200) target = $region28
        $region27: #{pendulum_node_vf.1} parent=11 // pred_region
          _
        $region28: #{pendulum_node_vf.1} parent=11 // pred_fallthru
          _
        // Predicated region
        $region29: #{pendulum_node_vf.1} parent=11 // pred_check
          %p203 = pneg %p150
        $region30: #{pendulum_node_vf.1} parent=11 // pred_check_branch
          %205 = sbr.rel (%p203) target = $region32
        $region31: #{pendulum_node_vf.1} parent=11 // pred_region
          _
        $region32: #{pendulum_node_vf.1} parent=11 // pred_fallthru
          _
      $region12: #{pendulum_node_vf.1} parent=5 // pred_fallthru
        _
      %p206 = scmp.lt.s32.totalorder %s19, 2
      // Predicated region
      $region33: #{pendulum_node_vf.1} parent=5 // pred_check
        %p207 = pneg %p206
      $region34: #{pendulum_node_vf.1} parent=5 // pred_check_branch
        %209 = sbr.rel (%p207) target = $region36
      $region35: #{pendulum_node_vf.1} parent=5 // pred_region
        // Predicated region
        $region37: #{pendulum_node_vf.1} parent=35 // pred_check
          %p210 = pneg %p39
        $region38: #{pendulum_node_vf.1} parent=35 // pred_check_branch
          %212 = sbr.rel (%p210) target = $region40
        $region39: #{pendulum_node_vf.1} parent=35 // pred_region
          %p213 = scmp.lt.s32.totalorder %s19, 1
          %s214 = scalar_select %p213, %s19, 1
          %s215 = smul.addr %s214, 4
          %s216 = scalar_lea.vmem %s1, %s215
        $region40: #{pendulum_node_vf.1} parent=35 // pred_fallthru
          _
      $region36: #{pendulum_node_vf.1} parent=5 // pred_fallthru
        _
      %p217 = scmp.le.s32.totalorder 1, %s19
      %p218 = scmp.lt.s32.totalorder %s19, 3
      %p219 = pnand %p217, %p218
      %p220 = pneg %p219
      // Predicated region
      $region41: #{pendulum_node_vf.1} parent=5 // pred_check
        _
      $region42: #{pendulum_node_vf.1} parent=5 // pred_check_branch
        %222 = sbr.rel (%p219) target = $region44
      $region43: #{pendulum_node_vf.1} parent=5 // pred_region
        %s223 = ssub.s32 %s19, 1
        %p224 = scmp.lt.s32.totalorder %s24, 1
        %s225 = scalar_select %p224, %s24, 1
        %s226 = smul.addr %s225, 4
        %s227 = scalar_lea.vmem %s1, %s226
        %p228 = pneg %p45
        %p229 = pneg %p42
        %p230 = pneg %p66
        %p231 = pneg %p63
        %p232 = pneg %p87
        %p233 = pneg %p84
        %p234 = pneg %p108
        %p235 = pneg %p105
        %p236 = pneg %p129
        %p237 = pneg %p126
        %p238 = pneg %p150
        %p239 = pneg %p147
        %p240 = pneg %p176
        %p241 = pneg %p173
        %s242 = sand.u32 %s163, 1
        %s243 = scalar_lea.sflag [#allocation6], %s242
        %s244 = sand.u32 %s163, 1
        %s245 = smul.addr %s244, 4
        %s246 = scalar_lea.vmem [#allocation5], %s245
        %p247 = scmp.lt.s32.totalorder %s24, 1
        %s248 = scalar_select %p247, %s24, 1
        %s249 = smul.addr %s248, 4
        %s250 = scalar_lea.vmem %s1, %s249
        %v251 = vld [vmem:[%s250] sm:$0x7]
        %s252 = sld [smem:[#allocation3]]
        %v253 = vld [vmem:[%s2] sm:$0xff]
        %v254 = vld [vmem:[%s2 + $0x8] sm:$0xff]
        %v255 = vld [vmem:[%s2 + $0x10] sm:$0xff]
        %v256 = vld [vmem:[%s2 + $0x18] sm:$0xff]
        %v257 = vstv %s252
        %v258 = vmul.f32 %v253, %v257
        %v259 = vmul.f32 %v254, %v257
        %v260 = vmul.f32 %v255, %v257
        %v261 = vmul.f32 %v256, %v257
        %v262 = vld [vmem:[%s3] sm:$0xff]
        %v263 = vld [vmem:[%s3 + $0x8] sm:$0xff]
        %v264 = vld [vmem:[%s3 + $0x10] sm:$0xff]
        %v265 = vld [vmem:[%s3 + $0x18] sm:$0xff]
        %267 = vset.pattern.permute.xlu0 0
        %268 = vperm.xlu0 %267, %v262
        %v269 = vpop.permute.xlu0 %268
        %272 = vset.pattern.permute.xlu0 0
        %273 = vperm.xlu0 %272, %v263
        %v274 = vpop.permute.xlu0 %273
        %277 = vset.pattern.permute.xlu0 0
        %278 = vperm.xlu0 %277, %v264
        %v279 = vpop.permute.xlu0 %278
        %282 = vset.pattern.permute.xlu0 0
        %283 = vperm.xlu0 %282, %v265
        %v284 = vpop.permute.xlu0 %283
        %v286 = vlaneseq
        %v287 = vshrl.u32 %v286, 7
        %v288 = vsub.s32 2, %v287
        %v289 = vrot.slane %v251, %v288
        %v290 = vmul.f32 %v269, %v289
        %v291 = vmul.f32 %v274, %v289
        %v292 = vmul.f32 %v279, %v289
        %v293 = vmul.f32 %v284, %v289
        %295 = vset.pattern.permute.xlu0 0
        %296 = vperm.xlu0 %295, %v258
        %v297 = vpop.permute.xlu0 %296
        %300 = vset.pattern.permute.xlu0 0
        %301 = vperm.xlu0 %300, %v259
        %v302 = vpop.permute.xlu0 %301
        %305 = vset.pattern.permute.xlu0 0
        %306 = vperm.xlu0 %305, %v260
        %v307 = vpop.permute.xlu0 %306
        %310 = vset.pattern.permute.xlu0 0
        %311 = vperm.xlu0 %310, %v261
        %v312 = vpop.permute.xlu0 %311
        %v314 = vadd.f32 %v297, %v290
        %v315 = vadd.f32 %v302, %v291
        %v316 = vadd.f32 %v307, %v292
        %v317 = vadd.f32 %v312, %v293
        %v318 = vld [vmem:[%s4] sm:$0xff]
        %v319 = vld [vmem:[%s4 + $0x8] sm:$0xff]
        %v320 = vld [vmem:[%s4 + $0x10] sm:$0xff]
        %v321 = vld [vmem:[%s4 + $0x18] sm:$0xff]
        %323 = vset.pattern.permute.xlu0 0
        %324 = vperm.xlu0 %323, %v318
        %v325 = vpop.permute.xlu0 %324
        %328 = vset.pattern.permute.xlu0 0
        %329 = vperm.xlu0 %328, %v319
        %v330 = vpop.permute.xlu0 %329
        %333 = vset.pattern.permute.xlu0 0
        %334 = vperm.xlu0 %333, %v320
        %v335 = vpop.permute.xlu0 %334
        %338 = vset.pattern.permute.xlu0 0
        %339 = vperm.xlu0 %338, %v321
        %v340 = vpop.permute.xlu0 %339
        %v342 = vadd.f32 %v314, %v325
        %v343 = vadd.f32 %v315, %v330
        %v344 = vadd.f32 %v316, %v335
        %v345 = vadd.f32 %v317, %v340
        %v346 = vtanh.pop %v342
        %v347 = vtanh.pop %v343
        %v348 = vtanh.pop %v344
        %v349 = vtanh.pop %v345
        %v350 = vld [vmem:[%s5] sm:$0xff]
        %v351 = vld [vmem:[%s5 + $0x8] sm:$0xff]
        %v352 = vld [vmem:[%s5 + $0x10] sm:$0xff]
        %v353 = vld [vmem:[%s5 + $0x18] sm:$0xff]
        %355 = vset.pattern.permute.xlu0 0
        %356 = vperm.xlu0 %355, %v350
        %v357 = vpop.permute.xlu0 %356
        %360 = vset.pattern.permute.xlu0 0
        %361 = vperm.xlu0 %360, %v351
        %v362 = vpop.permute.xlu0 %361
        %365 = vset.pattern.permute.xlu0 0
        %366 = vperm.xlu0 %365, %v352
        %v367 = vpop.permute.xlu0 %366
        %370 = vset.pattern.permute.xlu0 0
        %371 = vperm.xlu0 %370, %v353
        %v372 = vpop.permute.xlu0 %371
        %v374 = vmul.f32 %v357, %v346
        %v375 = vmul.f32 %v362, %v347
        %v376 = vmul.f32 %v367, %v348
        %v377 = vmul.f32 %v372, %v349
        %v378 = vadd.f32 %v374, %v375
        %v379 = vadd.f32 %v378, %v376
        %v380 = vadd.f32 %v379, %v377
        %v381 = vrot.slane %v380, 4
        %v382 = vadd.f32 %v380, %v381
        %v383 = vrot.slane %v382, 2
        %v384 = vadd.f32 %v382, %v383
        %v385 = vrot.slane %v384, 1
        %v386 = vadd.f32 %v384, %v385
        %v387 = vld [vmem:[#allocation4] sm:$0x1]
        %389 = vset.pattern.permute.xlu0 0
        %390 = vperm.xlu0 %389, %v387
        %v391 = vpop.permute.xlu0 %390
        %v393 = vlaneseq
        %v394 = vshrl.u32 %v393, 7
        %v395 = vsub.s32 0, %v394
        %v396 = vrot.slane %v391, %v395
        %v397 = vadd.f32 %v386, %v396
        %v398 = vmul.f32 %v251, 0.5
        %v399 = vsub.f32 0.0, %v398
        %v400 = vand.u32 2147483647, %v251
        %vm401 = vcmp.le.f32.partialorder %v400, 0.7853982
        %vm402 = vcmp.lt.s32.totalorder %v251, 0
        %v403 = vand.u32 %v251, 2139095040
        %v404 = vshrl.u32 %v403, 23
        %v405 = vsub.s32 %v404, 127
        %v406 = vand.u32 2147483647, %v251
        %v407 = vand.u32 %v406, 8388607
        %v408 = vor.u32 %v407, 8388608
        %v409 = vsub.s32 0, %v408
        %v410 = vadd.s32 %v405, 1
        %vm411 = vcmp.gt.s32.totalorder %v410, 0
        %v412 = vsel %vm411, %v410, 0
        %v413 = vshrl.u32 %v412, 5
        %v414 = vand.u32 %v412, 31
        %v415 = vsub.s32 32, %v414
        %v416 = vshrl.u32 683565275, %v415
        %v417 = vshll.u32 683565275, %v414
        %v418 = vshrl.u32 2475754826, %v415
        %v419 = vor.u32 %v417, %v418
        %v420 = vshll.u32 2475754826, %v414
        %v421 = vshrl.u32 2131351028, %v415
        %v422 = vor.u32 %v420, %v421
        %v423 = vshll.u32 2131351028, %v414
        %v424 = vshrl.u32 2102212464, %v415
        %v425 = vor.u32 %v423, %v424
        %v426 = vshll.u32 2102212464, %v414
        %v427 = vshrl.u32 920167782, %v415
        %v428 = vor.u32 %v426, %v427
        %v429 = vshll.u32 920167782, %v414
        %v430 = vshrl.u32 1326507024, %v415
        %v431 = vor.u32 %v429, %v430
        %vm432 = vcmp.lt.s32.totalorder %v413, 1
        %vm433 = vcmp.lt.s32.totalorder %v413, 2
        %vm434 = vcmp.lt.s32.totalorder %v413, 3
        %vm435 = vcmp.lt.s32.totalorder %v413, 4
        %v436 = vsel %vm432, %v416, %v419
        %v437 = vsel %vm435, %v425, 2102212464
        %v438 = vsel %vm434, %v422, %v437
        %v439 = vsel %vm433, %v436, %v438
        %v440 = vsel %vm432, %v419, %v422
        %v441 = vsel %vm435, %v428, 920167782
        %v442 = vsel %vm434, %v425, %v441
        %v443 = vsel %vm433, %v440, %v442
        %v444 = vsel %vm432, %v422, %v425
        %v445 = vsel %vm435, %v431, 1326507024
        %v446 = vsel %vm434, %v428, %v445
        %v447 = vsel %vm433, %v444, %v446
        %v448 = vshll.u32 %v408, 8
        %v449 = vmul.u32.u64.compose %v448, %v447
        %v450 = vextract.low.u32 %v449
        %v451 = vextract.high.u32 %v449
        %v452 = vmul.u32.u64.compose %v448, %v443
        %v453 = vextract.low.u32 %v452
        %v454 = vextract.high.u32 %v452
        %v455 = vmul.u32 %v448, %v439
        %v456 = vadd.s32 %v451, %v453
        %vm457 = vc.u32 %v451, %v453
        %v458 = vadd.s32 %v454, 1
        %v459 = vsel %vm457, %v458, %v454
        %v460 = vadd.s32 %v455, %v459
        %v461 = vadd.s32 %v460, 536870912
        %v462 = vshrl.u32 %v461, 30
        %v463 = vshll.u32 %v462, 30
        %v464 = vsub.s32 %v460, %v463
        %vm465 = vcmp.lt.s32.totalorder %v464, 0
        %v466 = vsub.s32 0, %v464
        %v467 = vsel %vm465, %v466, %v464
        %v468 = vclz %v467
        %v469 = vsub.s32 %v468, 2
        %vm470 = vcmp.gt.s32.totalorder 0, %v469
        %v471 = vsel %vm470, 0, %v469
        %v472 = vsub.s32 32, %v471
        %v473 = vshll.u32 %v464, %v471
        %v474 = vshrl.u32 %v456, %v472
        %v475 = vor.u32 %v473, %v474
        %v476 = vsub.s32 4294967266, %v471
        %v477 = vadd.s32 %v476, 127
        %v478 = vshll.u32 %v477, 23
        %v479 = vor.u32 4788187, %v478
        %v480 = vand.u32 2147483647, %v479
        %v482 = vcvt.s32.f32 %v475
        %v483 = vmul.f32 %v482, %v480
        %v484 = vxor.u32 %v483, 2147483648
        %v485 = vsel %vm402, %v484, %v483
        %v486 = vsub.s32 4, %v462
        %v487 = vsel %vm402, %v486, %v462
        %v488 = vsel %vm401, %v251, %v485
        %v489 = vsel %vm401, 0, %v487
        %v490 = vcosq.f32.pop %v488
        %v491 = vsinq.f32.pop %v488
        %vm492 = vweird.f32 %v251
        %v493 = vadd.s32 %v489, 3
        %v494 = vand.u32 %v493, 3
        %vm495 = vcmp.lt.s32.totalorder %v494, 2
        %vm496 = vcmp.eq.s32.totalorder %v494, 0
        %v497 = vxor.u32 %v491, 2147483648
        %v498 = vsel %vm496, %v490, %v497
        %vm499 = vcmp.eq.s32.totalorder %v494, 2
        %v500 = vxor.u32 %v490, 2147483648
        %v501 = vsel %vm499, %v500, %v491
        %v502 = vsel %vm495, %v498, %v501
        %v503 = vsel %vm492, nan, %v502
        %v505 = vrot.slane %v503, 6
        %v507 = vmul.f32 %v399, %v505
        %v508 = vlaneseq
        %v509 = vshrl.u32 %v508, 7
        %vm510 = vcmp.eq.s32.totalorder %v509, 0
        %vm511 = vcmp.eq.s32.totalorder %v509, 1
        %v512 = vlaneseq
        %v513 = vshrl.u32 %v512, 7
        %v514 = vsub.s32 2, %v513
        %v515 = vrot.slane %v507, %v514
        %v516 = vsel %vm511, %v515, %v397
        %v517 = vlaneseq
        %v518 = vshrl.u32 %v517, 7
        %v519 = vsub.s32 1, %v518
        %v520 = vrot.slane %v251, %v519
        %v521 = vsel %vm510, %v520, %v516
        %522 = vst [vmem:[%s246] sm:$0x7] %v521
        %s523 = sand.u32 %s163, 1
        %s524 = scalar_lea.sflag [#allocation6], %s523
        %s525 = sand.u32 %s163, 1
        %s526 = smul.addr %s525, 4
        %s527 = scalar_lea.vmem [#allocation5], %s526
        // Predicated region
        $region45: #{pendulum_node_vf.1} parent=43 // pred_check
          %p528 = pneg %p173
        $region46: #{pendulum_node_vf.1} parent=43 // pred_check_branch
          %530 = sbr.rel (%p528) target = $region48
        $region47: #{pendulum_node_vf.1} parent=43 // pred_region
          %s532 = ssub.s32 64, 64
          %533 = vsyncadd %s524, %s532
          %s534 = smul.addr %s24, 64
          %s535 = scalar_lea.hbm %s7, %s534
          %s537 = sshll.u32 %s527, 4
          %s538 = int_to_ptr.vmem [resolvable:$true] %s537
          %540 = dma.vmem_to_hbm [thread:$0]  %s538, 64, %s535, %s524
        $region48: #{pendulum_node_vf.1} parent=43 // pred_fallthru
          _
      $region44: #{pendulum_node_vf.1} parent=5 // pred_fallthru
        _
      %p541 = scmp.le.s32.totalorder 2, %s19
      // Predicated region
      $region49: #{pendulum_node_vf.1} parent=5 // pred_check
        %p542 = pneg %p541
      $region50: #{pendulum_node_vf.1} parent=5 // pred_check_branch
        %544 = sbr.rel (%p542) target = $region52
      $region51: #{pendulum_node_vf.1} parent=5 // pred_region
        %s545 = ssub.s32 %s19, 2
        // Predicated region
        $region53: #{pendulum_node_vf.1} parent=51 // pred_check
          %p546 = pneg %p179
        $region54: #{pendulum_node_vf.1} parent=51 // pred_check_branch
          %548 = sbr.rel (%p546) target = $region56
        $region55: #{pendulum_node_vf.1} parent=51 // pred_region
          %s549 = sand.u32 %s164, 1
          %s550 = scalar_lea.sflag [#allocation6], %s549
          %s551 = sand.u32 %s164, 1
          %s552 = smul.addr %s551, 4
          %s553 = scalar_lea.vmem [#allocation5], %s552
          %554 = dma.done %s550, 64
        $region56: #{pendulum_node_vf.1} parent=51 // pred_fallthru
          _
      $region52: #{pendulum_node_vf.1} parent=5 // pred_fallthru
        _
    $region6: #{pendulum_node_vf.1} parent=1 // loop_footer
      %s23 = sadd.s32 1, %s19
    $region7: #{pendulum_node_vf.1} parent=1 // loop_footer_branch
      %18 = sbr.rel target = $region3
    $region8: #{pendulum_node_vf.1} parent=1 // loop_exit
      _
    %555 = vsyncpa [#allocation6], 1
    %s556 = scalar_lea.sflag [#allocation6], 1
    %557 = vsyncpa %s556, 1

</llo_original>
